<compile_context>
chip_gen: v7x
topology: tpu7x:2x2x1
jax: 0.10.0
libtpu: 0.0.40
codegen_flags: <defaults>
</compile_context>

<pallas_src>
import jax
import jax.numpy as jnp
from jax.experimental import pallas as pl
from jax.experimental.pallas import tpu as pltpu


OUT_PAD = 128                        # lane-dense padded output width (multiple of 128)
VMEM_LIMIT = 24 * 1024 * 1024        # explicit scoped-VMEM limit (safe on v5e/v6e/v7x)
VMEM_TILE_BUDGET = 20 * 1024 * 1024  # what the tile picker assumes (headroom for sems etc.)


def measurement_kernel(x_ref, sel_ref, o_ref):
    # x_ref:   (tile_bs, in_dim)  VMEM
    # sel_ref: (in_dim, OUT_PAD)  VMEM  (transposed, lane-padded 0/1 selection matrix)
    # o_ref:   (tile_bs, OUT_PAD) VMEM  (lane-dense -> unmasked full-vreg stores)
    #
    # Exact gather-as-matmul: each output column has exactly one 1.0 in sel, so the
    # f32 MXU matmul reproduces x bit-exactly (verified against jnp.take at runtime).
    o_ref[...] = jnp.dot(
        x_ref[...], sel_ref[...], preferred_element_type=jnp.float32
    ).astype(o_ref.dtype)


def make_selection(key, in_dim, out_dim, out_pad=OUT_PAD):
    """Deterministic analogue of np.delete(eye, sample, axis=0): keep `out_dim`
    sorted row indices of the identity.  Returned pre-transposed to
    (in_dim, out_pad) with zero-padded extra columns, built ONCE at init time
    (no per-call transpose)."""
    perm = jax.random.permutation(key, in_dim)
    keep = jnp.sort(perm[:out_dim])                    # sorted, like np.delete
    sel = jnp.zeros((in_dim, out_pad), jnp.float32)
    sel = sel.at[keep, jnp.arange(out_dim)].set(1.0)   # column j = one-hot of keep[j]
    return sel, keep


def _pick_tile_bs(bs, in_dim, out_pad=OUT_PAD, budget=VMEM_TILE_BUDGET):
    """Largest multiple-of-8 batch tile (capped at 1024) whose double-buffered
    tiles + resident selection matrix fit the assumed VMEM budget, with >=2 grid
    steps whenever possible so v7x's 2 TensorCores both get work."""
    if bs <= 8:
        return bs                                  # one full-array block; grid = (1,)
    per_row = 2 * (in_dim + out_pad) * 4           # double-buffered x-tile + out-tile bytes/row
    fixed = 2 * in_dim * out_pad * 4               # grid-invariant selection matrix
    avail = max(budget - fixed, per_row * 8)
    tile = max(8, min(1024, (avail // per_row) // 8 * 8))
    bs8 = (bs + 7) // 8 * 8
    if bs8 >= 16:
        # Guarantee >= 2 grid steps -> "parallel" batch axis shards across both
        # TensorCores on v7x (no effect on single-TC v5e/v6e).
        tile = min(tile, ((bs8 // 2 + 7) // 8) * 8)
    return int(min(tile, bs8))


def _measurement_forward_pallas(x, sel_padded, out_dim):
    """x: (bs, in_dim), sel_padded: (in_dim, OUT_PAD) -> (bs, out_dim)."""
    bs, in_dim = x.shape
    in_dim_s, out_pad = sel_padded.shape
    assert in_dim_s == in_dim

    tile_bs = _pick_tile_bs(bs, in_dim, out_pad)
    # No wrapper-side jnp.pad: Pallas masks the partial last block itself.
    grid = (pl.cdiv(bs, tile_bs),)

    out_padded = pl.pallas_call(
        measurement_kernel,
        out_shape=jax.ShapeDtypeStruct((bs, out_pad), x.dtype),
        grid_spec=pltpu.PrefetchScalarGridSpec(
            num_scalar_prefetch=0,
            grid=grid,
            in_specs=[
                pl.BlockSpec((tile_bs, in_dim), lambda i: (i, 0)),
                # Grid-invariant selection matrix (fetched once, stays resident).
                # Single-buffering it / storing it as int8 only matters at large
                # in_dim (it is 128 KiB here), so it is left double-buffered f32
                # for portability across jax versions.
                pl.BlockSpec((in_dim, out_pad), lambda i: (0, 0)),
            ],
            out_specs=pl.BlockSpec((tile_bs, out_pad), lambda i: (i, 0)),
        ),
        compiler_params=pltpu.CompilerParams(
            dimension_semantics=("parallel",),   # shard batch across TCs (v7x megacore)
            vmem_limit_bytes=VMEM_LIMIT,         # keep compiler budget == tile-math budget
        ),
        cost_estimate=pl.CostEstimate(
            flops=2 * bs * in_dim * out_pad,
            transcendentals=0,
            bytes_accessed=4 * (bs * in_dim + in_dim * out_pad + bs * out_pad),
        ),
    )(x, sel_padded)

    # Drop lane padding outside the kernel (rows are already exactly bs).
    return out_padded[:, :out_dim]


def measurement_forward(x, sel_padded, keep, out_dim, use_pallas=None):
    """Forward pass of `Measurement`: out = x @ measure.T == gather of kept columns."""
    bs, in_dim = x.shape
    if use_pallas is None:
        # At the module's real shapes (a few KiB) the op is a pure gather and is
        # entirely pallas_call-launch-overhead bound -> use XLA gather / let it fuse.
        use_pallas = bs * in_dim * x.dtype.itemsize >= (1 << 20)
    if not use_pallas:
        return jnp.take(x, keep, axis=1)
    return _measurement_forward_pallas(x, sel_padded, out_dim)


if __name__ == "__main__":
    # Small shapes consistent with the module: in_dim = 16**2, out_dim = 25, bs = 2.
    bs, in_dim, out_dim = 2, 16 * 16, 25

    key = jax.random.PRNGKey(0)
    k_meas, k_x = jax.random.split(key, 2)

    # One-time (init-time) construction of the transposed, lane-padded selection
    # matrix.  self.net is unused in forward -> omitted.
    sel_padded, keep = make_selection(k_meas, in_dim, out_dim)   # (256, 128)
    x = jax.random.normal(k_x, (bs, in_dim), dtype=jnp.float32)  # (2, 256)

    # Force the Pallas path once to exercise and verify the kernel.
    fwd_kernel = jax.jit(
        lambda xx: measurement_forward(xx, sel_padded, keep, out_dim, use_pallas=True)
    )
    out = jax.block_until_ready(fwd_kernel(x))

    # Reference: per-sample mm + cat + reshape == x @ measure.T == column gather.
    measure = jnp.eye(in_dim, dtype=jnp.float32)[keep, :]        # (25, 256)
    ref = jnp.dot(x, measure.T, precision=jax.lax.Precision.HIGHEST)
    gathered = jnp.take(x, keep, axis=1)

    assert out.shape == (bs, out_dim)
    assert jnp.allclose(out, ref, atol=1e-6, rtol=1e-6)
    # The kernel is an exact gather (0/1 selection matrix, one nonzero per column).
    assert jnp.array_equal(out, gathered)

    # Default dispatch at these tiny shapes: XLA gather fast path (no kernel launch).
    fwd_auto = jax.jit(lambda xx: measurement_forward(xx, sel_padded, keep, out_dim))
    out_auto = jax.block_until_ready(fwd_auto(x))
    assert jnp.array_equal(out_auto, out)

    print("KERNEL_OK")
</pallas_src>

<mosaic_0001>
module attributes {stable_mosaic.version = 11 : i64} {
  func.func @measurement_kernel(%arg0: i32, %arg1: memref<2x256xf32, #tpu.memory_space<vmem>>, %arg2: memref<256x128xf32, #tpu.memory_space<vmem>>, %arg3: memref<2x128xf32, #tpu.memory_space<vmem>>) attributes {dimension_semantics = [#tpu.dimension_semantics<parallel>], iteration_bounds = array<i64: 1>, scalar_prefetch = 0 : i64, scratch_operands = 0 : i64, tpu.core_type = #tpu.core_type<tc>, window_params = [{transform_indices = @transform_0, window_bounds = array<i64: 2, 256>}, {pipeline_mode = #tpu.pipeline_mode<synchronous>, transform_indices = @transform_1, window_bounds = array<i64: 256, 128>}, {transform_indices = @transform_2, window_bounds = array<i64: 2, 128>}]} {
    %c0 = arith.constant 0 : index
    %c0_0 = arith.constant 0 : index
    %0 = vector.load %arg1[%c0, %c0_0] : memref<2x256xf32, #tpu.memory_space<vmem>>, vector<2x256xf32>
    %c0_1 = arith.constant 0 : index
    %c0_2 = arith.constant 0 : index
    %1 = vector.load %arg2[%c0_1, %c0_2] : memref<256x128xf32, #tpu.memory_space<vmem>>, vector<256x128xf32>
    %cst = arith.constant dense<0.000000e+00> : vector<2x128xf32>
    %2 = tpu.matmul %0, %1, %cst {dimension_numbers = #tpu.dot_dimension_numbers<[1], [0], [0], [1], [0, 0, 1, 1], [], []>} : vector<2x256xf32>, vector<256x128xf32>, vector<2x128xf32> -> vector<2x128xf32>
    %c0_3 = arith.constant 0 : index
    %c0_4 = arith.constant 0 : index
    %3 = vector.load %arg3[%c0_3, %c0_4] : memref<2x128xf32, #tpu.memory_space<vmem>>, vector<2x128xf32>
    tpu.vector_store %arg3[%c0_3, %c0_4], %2 {strides = array<i32>} : memref<2x128xf32, #tpu.memory_space<vmem>>, vector<2x128xf32>,
    return
  }
  func.func @transform_0(%arg0: i32) -> (i32, i32) {
    %c0_i32 = arith.constant 0 : i32
    %c0_i32_0 = arith.constant 0 : i32
    return %arg0, %c0_i32 : i32, i32
  }
  func.func @transform_1(%arg0: i32) -> (i32, i32) {
    %c0_i32 = arith.constant 0 : i32
    %c0_i32_0 = arith.constant 0 : i32
    %c0_i32_1 = arith.constant 0 : i32
    return %c0_i32, %c0_i32_0 : i32, i32
  }
  func.func @transform_2(%arg0: i32) -> (i32, i32) {
    %c0_i32 = arith.constant 0 : i32
    %c0_i32_0 = arith.constant 0 : i32
    return %arg0, %c0_i32 : i32, i32
  }
}

</mosaic_0001>

<llo_original>
// kernel: _lambda_.1
$region0: #{_lambda_.1}
  #allocation0 [shape = 'u32[]', space=smem, size = 0x4, offset = 0x4, fixed_abs, tag = 'smem constant byte address 0x4 - core index']
  #allocation1 [shape = 'u32[144,128]{1,0:T(1,128)}', space=vmem, size = 0x12000, scoped, tag = 'internal scratch']
  %s0 = inlined_call_operand.hbm [shape: f32[2,256], index: 0, kind: input, shape index: {}]
  %s1 = inlined_call_operand.hbm [shape: f32[256,128], index: 1, kind: input, shape index: {}]
  %s2 = inlined_call_operand.hbm [shape: f32[2,128], index: 2, kind: output, shape index: {}]
  %s3 = sld [smem:[#allocation0]]
  $region26: #{_lambda_.1} parent=0
    _
  %s5 = ssub.s32 1, %s3
  %s6 = scalar_select 0, %s5, %s3
  $region1: #{_lambda_.1} parent=0
    #allocation2 [shape = 'u8[2048]{0}', space=vmem, size = 0x800, scoped, tag = 'input window, operand 0, single buffered']
    #allocation3 [shape = 's32[1]{0}', space=sflag, size = 0x4, scoped, tag = 'scoped memory for _lambda_.1']
    #allocation4 [shape = 's32[1]{0}', space=sflag, size = 0x4, scoped, tag = 'scoped memory for _lambda_.1']
    #allocation5 [shape = 'u8[131072]{0}', space=vmem, size = 0x20000, scoped, tag = 'input window, operand 1, single buffered']
    #allocation6 [shape = 's32[1]{0}', space=sflag, size = 0x4, scoped, tag = 'scoped memory for _lambda_.1']
    #allocation7 [shape = 'u8[1024]{0}', space=vmem, size = 0x400, scoped, tag = 'output window, operand 0, single buffered']
    %7 = vsyncpa [#allocation3], 0
    %8 = vsyncpa [#allocation6], 0
    %9 = vsyncpa [#allocation4], 0
    // Predicated region
    $region2: #{_lambda_.1} parent=1 // pred_check
      _
    $region3: #{_lambda_.1} parent=1 // pred_check_branch
      %11 = sbr.rel (0) target = $region5
    $region4: #{_lambda_.1} parent=1 // pred_region
      %s13 = ssub.s32 64, 64
      %14 = vsyncadd [#allocation3], %s13
      %s16 = sshll.u32 [#allocation2], 4
      %s17 = int_to_ptr.vmem [resolvable:$true] %s16
      %19 = dma.hbm_to_vmem [thread:$0]  %s0, 64, %s17, [#allocation3]
    $region5: #{_lambda_.1} parent=1 // pred_fallthru
      _
    // Predicated region
    $region6: #{_lambda_.1} parent=1 // pred_check
      _
    $region7: #{_lambda_.1} parent=1 // pred_check_branch
      %21 = sbr.rel (0) target = $region9
    $region8: #{_lambda_.1} parent=1 // pred_region
      %s23 = ssub.s32 4096, 4096
      %24 = vsyncadd [#allocation6], %s23
      %s25 = sshll.u32 [#allocation5], 4
      %s26 = int_to_ptr.vmem [resolvable:$true] %s25
      %31 = dma.hbm_to_vmem [thread:$0]  %s1, 4096, %s26, [#allocation6], 128, 128, 8
    $region9: #{_lambda_.1} parent=1 // pred_fallthru
      _
    // Predicated region
    $region10: #{_lambda_.1} parent=1 // pred_check
      _
    $region11: #{_lambda_.1} parent=1 // pred_check_branch
      %33 = sbr.rel (0) target = $region13
    $region12: #{_lambda_.1} parent=1 // pred_region
      %34 = dma.done [#allocation3], 64
    $region13: #{_lambda_.1} parent=1 // pred_fallthru
      _
    // Predicated region
    $region14: #{_lambda_.1} parent=1 // pred_check
      _
    $region15: #{_lambda_.1} parent=1 // pred_check_branch
      %36 = sbr.rel (0) target = $region17
    $region16: #{_lambda_.1} parent=1 // pred_region
      %37 = dma.done [#allocation6], 4096
    $region17: #{_lambda_.1} parent=1 // pred_fallthru
      _
    %v38 = vld [vmem:[#allocation2] sm:$0xf]
    %v39 = vld [vmem:[#allocation5] sm:$0xff]
    %v40 = vld [vmem:[#allocation5 + $0x8] sm:$0xff]
    %v41 = vld [vmem:[#allocation5 + $0x10] sm:$0xff]
    %v42 = vld [vmem:[#allocation5 + $0x18] sm:$0xff]
    %v43 = vld [vmem:[#allocation5 + $0x20] sm:$0xff]
    %v44 = vld [vmem:[#allocation5 + $0x28] sm:$0xff]
    %v45 = vld [vmem:[#allocation5 + $0x30] sm:$0xff]
    %v46 = vld [vmem:[#allocation5 + $0x38] sm:$0xff]
    %v47 = vld [vmem:[#allocation5 + $0x40] sm:$0xff]
    %v48 = vld [vmem:[#allocation5 + $0x48] sm:$0xff]
    %v49 = vld [vmem:[#allocation5 + $0x50] sm:$0xff]
    %v50 = vld [vmem:[#allocation5 + $0x58] sm:$0xff]
    %v51 = vld [vmem:[#allocation5 + $0x60] sm:$0xff]
    %v52 = vld [vmem:[#allocation5 + $0x68] sm:$0xff]
    %v53 = vld [vmem:[#allocation5 + $0x70] sm:$0xff]
    %v54 = vld [vmem:[#allocation5 + $0x78] sm:$0xff]
    %v55 = vld [vmem:[#allocation5 + $0x80] sm:$0xff]
    %v56 = vld [vmem:[#allocation5 + $0x88] sm:$0xff]
    %v57 = vld [vmem:[#allocation5 + $0x90] sm:$0xff]
    %v58 = vld [vmem:[#allocation5 + $0x98] sm:$0xff]
    %v59 = vld [vmem:[#allocation5 + $0xa0] sm:$0xff]
    %v60 = vld [vmem:[#allocation5 + $0xa8] sm:$0xff]
    %v61 = vld [vmem:[#allocation5 + $0xb0] sm:$0xff]
    %v62 = vld [vmem:[#allocation5 + $0xb8] sm:$0xff]
    %v63 = vld [vmem:[#allocation5 + $0xc0] sm:$0xff]
    %v64 = vld [vmem:[#allocation5 + $0xc8] sm:$0xff]
    %v65 = vld [vmem:[#allocation5 + $0xd0] sm:$0xff]
    %v66 = vld [vmem:[#allocation5 + $0xd8] sm:$0xff]
    %v67 = vld [vmem:[#allocation5 + $0xe0] sm:$0xff]
    %v68 = vld [vmem:[#allocation5 + $0xe8] sm:$0xff]
    %v69 = vld [vmem:[#allocation5 + $0xf0] sm:$0xff]
    %v70 = vld [vmem:[#allocation5 + $0xf8] sm:$0xff]
    %v73 = vunpack.c.l.s4 1983009808
    %v74 = vunpack.c.0.s8 %v73
    %v75 = vlaneseq
    %v76 = vshrl.u32 %v75, 7
    %v77 = vsub.s32 %v74, %v76
    %v78 = vrot.slane %v38, %v77
    %v79 = vcombine.high %v78, %v78
    %82 = vmatprep.subr.mxu0 0.0
    %83 = vmatpush1.msra.mxu0 %v39
    %84 = vmatprep.subr.mxu0 0.0
    %85 = vmatpush1.msra.mxu0 %v40
    %86 = vmatprep.subr.mxu0 0.0
    %87 = vmatpush1.msra.mxu0 %v41
    %88 = vmatprep.subr.mxu0 0.0
    %89 = vmatpush1.msra.mxu0 %v42
    %90 = vmatprep.subr.mxu0 0.0
    %91 = vmatpush1.msra.mxu0 %v43
    %92 = vmatprep.subr.mxu0 0.0
    %93 = vmatpush1.msra.mxu0 %v44
    %94 = vmatprep.subr.mxu0 0.0
    %95 = vmatpush1.msra.mxu0 %v45
    %96 = vmatprep.subr.mxu0 0.0
    %97 = vmatpush1.msra.mxu0 %v46
    %98 = vmatprep.subr.mxu0 0.0
    %99 = vmatpush1.msra.mxu0 %v47
    %100 = vmatprep.subr.mxu0 0.0
    %101 = vmatpush1.msra.mxu0 %v48
    %102 = vmatprep.subr.mxu0 0.0
    %103 = vmatpush1.msra.mxu0 %v49
    %104 = vmatprep.subr.mxu0 0.0
    %105 = vmatpush1.msra.mxu0 %v50
    %106 = vmatprep.subr.mxu0 0.0
    %107 = vmatpush1.msra.mxu0 %v51
    %108 = vmatprep.subr.mxu0 0.0
    %109 = vmatpush1.msra.mxu0 %v52
    %110 = vmatprep.subr.mxu0 0.0
    %111 = vmatpush1.msra.mxu0 %v53
    %112 = vmatprep.subr.mxu0 0.0
    %113 = vmatpush1.msra.mxu0 %v54
    %114 = vmatprep.subr.mxu0 0.0
    %115 = vmatpush1.msra.mxu0 %v55
    %116 = vmatprep.subr.mxu0 0.0
    %117 = vmatpush1.msra.mxu0 %v56
    %118 = vmatprep.subr.mxu0 0.0
    %119 = vmatpush1.msra.mxu0 %v57
    %120 = vmatprep.subr.mxu0 0.0
    %121 = vmatpush1.msra.mxu0 %v58
    %122 = vmatprep.subr.mxu0 0.0
    %123 = vmatpush1.msra.mxu0 %v59
    %124 = vmatprep.subr.mxu0 0.0
    %125 = vmatpush1.msra.mxu0 %v60
    %126 = vmatprep.subr.mxu0 0.0
    %127 = vmatpush1.msra.mxu0 %v61
    %128 = vmatprep.subr.mxu0 0.0
    %129 = vmatpush1.msra.mxu0 %v62
    %130 = vmatprep.subr.mxu0 0.0
    %131 = vmatpush1.msra.mxu0 %v63
    %132 = vmatprep.subr.mxu0 0.0
    %133 = vmatpush1.msra.mxu0 %v64
    %134 = vmatprep.subr.mxu0 0.0
    %135 = vmatpush1.msra.mxu0 %v65
    %136 = vmatprep.subr.mxu0 0.0
    %137 = vmatpush1.msra.mxu0 %v66
    %138 = vmatprep.subr.mxu0 0.0
    %139 = vmatpush1.msra.mxu0 %v67
    %140 = vmatprep.subr.mxu0 0.0
    %141 = vmatpush1.msra.mxu0 %v68
    %142 = vmatprep.subr.mxu0 0.0
    %143 = vmatpush1.msra.mxu0 %v69
    %144 = vmatprep.subr.mxu0 0.0
    %145 = vmatpush1.msra.mxu0 %v70
    %146 = vmatprep.mubr.f32.mxu0 %v79
    %147 = vmatmul.mubr.f32.gmra.mrb[0].mxu0 %v78
    %v148 = vpop.f32.mrb[0].mxu0
    %v149 = vadd.f32 0.0, %v148
    %v150 = vpop.f32.mrb[0].mxu0
    %151 = vdwg.mxu0
    %152 = vst [vmem:[#allocation7] sm:$0x3] %v149
    // Predicated region
    $region18: #{_lambda_.1} parent=1 // pred_check
      _
    $region19: #{_lambda_.1} parent=1 // pred_check_branch
      %154 = sbr.rel (0) target = $region21
    $region20: #{_lambda_.1} parent=1 // pred_region
      %s156 = ssub.s32 32, 32
      %157 = vsyncadd [#allocation4], %s156
      %s159 = sshll.u32 [#allocation7], 4
      %s160 = int_to_ptr.vmem [resolvable:$true] %s159
      %162 = dma.vmem_to_hbm [thread:$0]  %s160, 32, %s2, [#allocation4]
    $region21: #{_lambda_.1} parent=1 // pred_fallthru
      _
    // Predicated region
    $region22: #{_lambda_.1} parent=1 // pred_check
      _
    $region23: #{_lambda_.1} parent=1 // pred_check_branch
      %164 = sbr.rel (0) target = $region25
    $region24: #{_lambda_.1} parent=1 // pred_region
      %165 = dma.done [#allocation4], 32
    $region25: #{_lambda_.1} parent=1 // pred_fallthru
      _
    %166 = vsyncpa [#allocation3], 1
    %167 = vsyncpa [#allocation6], 1
    %168 = vsyncpa [#allocation4], 1

</llo_original>
